<compile_context>
chip_gen: v5e
topology: v5e:2x2
jax: 0.10.0
libtpu: 0.0.40
codegen_flags: <defaults>
</compile_context>

<pallas_src>
import jax
import jax.numpy as jnp
from jax.experimental import pallas as pl
from jax.experimental.pallas import tpu as pltpu


def _pwff_kernel(x_ref, w1_ref, b1_ref, w2_ref, b2_ref, o_ref):
    # x_ref: (TM, H) f32        w1_ref/w2_ref: (H, H) bf16 (already transposed)
    # b1_ref/b2_ref: (1, H) f32   o_ref: (TM, H) f32
    x_f32 = x_ref[...].astype(jnp.float32)
    x_bf = x_f32.astype(jnp.bfloat16)                      # MXU input only

    # First 1x1 conv: bf16 MXU matmul, f32 accumulate; bias + ReLU in f32.
    h = jnp.dot(x_bf, w1_ref[...], preferred_element_type=jnp.float32)
    h = jnp.maximum(h + b1_ref[...], 0.0)

    # Second 1x1 conv: bf16 into the MXU, f32 accumulate.
    y = jnp.dot(h.astype(jnp.bfloat16), w2_ref[...],
                preferred_element_type=jnp.float32)

    # Bias + f32 residual (exact skip connection), single lane-dense store.
    o_ref[...] = (y + b2_ref[...] + x_f32).astype(o_ref.dtype)


def _round_up(n, m):
    return ((n + m - 1) // m) * m


def pointwise_feedforward(x, w1, b1, w2, b2, *, tile_m=1024):
    """x: (B, L, H) float32. w1, w2: (H_out, H_in) conv weights (k=1 squeezed).
    b1, b2: (H,). Returns (B, L, H) in x.dtype."""
    B, L, H = x.shape
    M = B * L

    # Token tiling: big tiles amortize per-step overhead; ragged last tile is
    # masked by Pallas (cdiv grid).  Cap TM so grid_m >= 2 when M permits, so
    # the "parallel" axis can shard across v7x's two TensorCores.
    if M <= 8:
        TM = M                                   # full dim (always legal)
    else:
        TM = min(_round_up(tile_m, 8), _round_up(pl.cdiv(M, 2), 8))
    grid_m = pl.cdiv(M, TM)

    # Views / tiny casts only — no extra HBM pass over the activations.
    x2d = x.reshape(M, H)
    w1t = w1.T.astype(jnp.bfloat16)              # (H_in, H_out)
    w2t = w2.T.astype(jnp.bfloat16)
    b1r = b1.reshape(1, H).astype(jnp.float32)
    b2r = b2.reshape(1, H).astype(jnp.float32)

    cost = pl.CostEstimate(
        flops=4 * M * H * H,                     # two (M,H)x(H,H) matmuls
        transcendentals=0,
        bytes_accessed=2 * M * H * 4 + 2 * H * H * 2 + 2 * H * 4,
    )

    out = pl.pallas_call(
        _pwff_kernel,
        out_shape=jax.ShapeDtypeStruct((M, H), jnp.float32),
        grid_spec=pltpu.PrefetchScalarGridSpec(
            num_scalar_prefetch=0,
            grid=(grid_m,),
            in_specs=[
                pl.BlockSpec((TM, H), lambda i: (i, 0)),   # x tile (pipelined)
                pl.BlockSpec((H, H), lambda i: (0, 0)),    # W1^T  (resident)
                pl.BlockSpec((1, H), lambda i: (0, 0)),    # b1    (resident)
                pl.BlockSpec((H, H), lambda i: (0, 0)),    # W2^T  (resident)
                pl.BlockSpec((1, H), lambda i: (0, 0)),    # b2    (resident)
            ],
            out_specs=pl.BlockSpec((TM, H), lambda i: (i, 0)),
        ),
        compiler_params=pltpu.CompilerParams(
            dimension_semantics=("parallel",)),
        cost_estimate=cost,
    )(x2d, w1t, b1r, w2t, b2r)

    return out.reshape(B, L, H).astype(x.dtype)


def _ref(x, w1, b1, w2, b2):
    # plain-JAX f32 reference of the same math
    h = jnp.maximum(jnp.einsum("blh,oh->blo", x, w1) + b1, 0.0)
    y = jnp.einsum("blh,oh->blo", h, w2) + b2
    return y + x


def _make_params(key, H):
    kw1, kb1, kw2, kb2 = jax.random.split(key, 4)
    # Conv1d(H, H, kernel_size=1) weights: (H_out, H_in, 1) -> squeeze last dim.
    # Deterministic init mimicking PyTorch's uniform(-1/sqrt(H), 1/sqrt(H)).
    bound = 1.0 / (H ** 0.5)
    w1 = jax.random.uniform(kw1, (H, H), jnp.float32, -bound, bound)
    b1 = jax.random.uniform(kb1, (H,), jnp.float32, -bound, bound)
    w2 = jax.random.uniform(kw2, (H, H), jnp.float32, -bound, bound)
    b2 = jax.random.uniform(kb2, (H,), jnp.float32, -bound, bound)
    return w1, b1, w2, b2


if __name__ == "__main__":
    key = jax.random.PRNGKey(0)

    # Case 1: small SASRec-ish shape (M=16 -> two tiny tiles, H=32 unaligned).
    B, L, H = 2, 8, 32
    k1, k2, k3, k4 = jax.random.split(key, 4)
    x = jax.random.normal(k1, (B, L, H), dtype=jnp.float32)
    w1, b1, w2, b2 = _make_params(k2, H)
    out = pointwise_feedforward(x, w1, b1, w2, b2)
    jax.block_until_ready(out)
    ref = _ref(x, w1, b1, w2, b2)
    assert out.shape == (B, L, H)
    # bf16 MXU inputs -> looser tolerance than pure f32 (residual is exact f32).
    assert jnp.allclose(out, ref, atol=5e-2, rtol=5e-2), "mismatch vs reference (case 1)"

    # Case 2: exercises multi-tile grid + unaligned H (M=800 -> 2 tiles of 400).
    B2, L2, H2 = 4, 200, 50
    x2 = jax.random.normal(k3, (B2, L2, H2), dtype=jnp.float32)
    w1b, b1b, w2b, b2b = _make_params(k4, H2)
    out2 = pointwise_feedforward(x2, w1b, b1b, w2b, b2b)
    jax.block_until_ready(out2)
    ref2 = _ref(x2, w1b, b1b, w2b, b2b)
    assert out2.shape == (B2, L2, H2)
    assert jnp.allclose(out2, ref2, atol=5e-2, rtol=5e-2), "mismatch vs reference (case 2)"

    print("KERNEL_OK")
</pallas_src>

<mosaic_0001>
module attributes {stable_mosaic.version = 11 : i64} {
  func.func @_pwff_kernel(%arg0: i32, %arg1: memref<8x32xf32, #tpu.memory_space<vmem>>, %arg2: memref<32x32xbf16, #tpu.memory_space<vmem>>, %arg3: memref<1x32xf32, #tpu.memory_space<vmem>>, %arg4: memref<32x32xbf16, #tpu.memory_space<vmem>>, %arg5: memref<1x32xf32, #tpu.memory_space<vmem>>, %arg6: memref<8x32xf32, #tpu.memory_space<vmem>>) attributes {dimension_semantics = [#tpu.dimension_semantics<parallel>], iteration_bounds = array<i64: 2>, scalar_prefetch = 0 : i64, scratch_operands = 0 : i64, tpu.core_type = #tpu.core_type<tc>, window_params = [{transform_indices = @transform_0, window_bounds = array<i64: 8, 32>}, {pipeline_mode = #tpu.pipeline_mode<synchronous>, transform_indices = @transform_1, window_bounds = array<i64: 32, 32>}, {pipeline_mode = #tpu.pipeline_mode<synchronous>, transform_indices = @transform_2, window_bounds = array<i64: 1, 32>}, {pipeline_mode = #tpu.pipeline_mode<synchronous>, transform_indices = @transform_3, window_bounds = array<i64: 32, 32>}, {pipeline_mode = #tpu.pipeline_mode<synchronous>, transform_indices = @transform_4, window_bounds = array<i64: 1, 32>}, {transform_indices = @transform_5, window_bounds = array<i64: 8, 32>}]} {
    %c0 = arith.constant 0 : index
    %c0_0 = arith.constant 0 : index
    %0 = vector.load %arg1[%c0, %c0_0] : memref<8x32xf32, #tpu.memory_space<vmem>>, vector<8x32xf32>
    %1 = arith.truncf %0 : vector<8x32xf32> to vector<8x32xbf16>
    %c0_1 = arith.constant 0 : index
    %c0_2 = arith.constant 0 : index
    %2 = vector.load %arg2[%c0_1, %c0_2] : memref<32x32xbf16, #tpu.memory_space<vmem>>, vector<32x32xbf16>
    %cst = arith.constant dense<0.000000e+00> : vector<8x32xf32>
    %3 = tpu.matmul %1, %2, %cst {dimension_numbers = #tpu.dot_dimension_numbers<[1], [0], [0], [1], [0, 0, 1, 1], [], []>} : vector<8x32xbf16>, vector<32x32xbf16>, vector<8x32xf32> -> vector<8x32xf32>
    %c0_3 = arith.constant 0 : index
    %c0_4 = arith.constant 0 : index
    %4 = vector.load %arg3[%c0_3, %c0_4] : memref<1x32xf32, #tpu.memory_space<vmem>>, vector<1x32xf32>
    %5 = vector.broadcast %4 : vector<1x32xf32> to vector<8x32xf32>
    %6 = arith.addf %3, %5 : vector<8x32xf32>
    %cst_5 = arith.constant 0.000000e+00 : f32
    %7 = vector.broadcast %cst_5 : f32 to vector<8x32xf32>
    %8 = arith.maximumf %6, %7 : vector<8x32xf32>
    %9 = arith.truncf %8 : vector<8x32xf32> to vector<8x32xbf16>
    %c0_6 = arith.constant 0 : index
    %c0_7 = arith.constant 0 : index
    %10 = vector.load %arg4[%c0_6, %c0_7] : memref<32x32xbf16, #tpu.memory_space<vmem>>, vector<32x32xbf16>
    %cst_8 = arith.constant dense<0.000000e+00> : vector<8x32xf32>
    %11 = tpu.matmul %9, %10, %cst_8 {dimension_numbers = #tpu.dot_dimension_numbers<[1], [0], [0], [1], [0, 0, 1, 1], [], []>} : vector<8x32xbf16>, vector<32x32xbf16>, vector<8x32xf32> -> vector<8x32xf32>
    %c0_9 = arith.constant 0 : index
    %c0_10 = arith.constant 0 : index
    %12 = vector.load %arg5[%c0_9, %c0_10] : memref<1x32xf32, #tpu.memory_space<vmem>>, vector<1x32xf32>
    %13 = vector.broadcast %12 : vector<1x32xf32> to vector<8x32xf32>
    %14 = arith.addf %11, %13 : vector<8x32xf32>
    %15 = arith.addf %14, %0 : vector<8x32xf32>
    %c0_11 = arith.constant 0 : index
    %c0_12 = arith.constant 0 : index
    %16 = vector.load %arg6[%c0_11, %c0_12] : memref<8x32xf32, #tpu.memory_space<vmem>>, vector<8x32xf32>
    tpu.vector_store %arg6[%c0_11, %c0_12], %15 {strides = array<i32>} : memref<8x32xf32, #tpu.memory_space<vmem>>, vector<8x32xf32>,
    return
  }
  func.func @transform_0(%arg0: i32) -> (i32, i32) {
    %c0_i32 = arith.constant 0 : i32
    %c0_i32_0 = arith.constant 0 : i32
    return %arg0, %c0_i32 : i32, i32
  }
  func.func @transform_1(%arg0: i32) -> (i32, i32) {
    %c0_i32 = arith.constant 0 : i32
    %c0_i32_0 = arith.constant 0 : i32
    %c0_i32_1 = arith.constant 0 : i32
    return %c0_i32, %c0_i32_0 : i32, i32
  }
  func.func @transform_2(%arg0: i32) -> (i32, i32) {
    %c0_i32 = arith.constant 0 : i32
    %c0_i32_0 = arith.constant 0 : i32
    %c0_i32_1 = arith.constant 0 : i32
    return %c0_i32, %c0_i32_0 : i32, i32
  }
  func.func @transform_3(%arg0: i32) -> (i32, i32) {
    %c0_i32 = arith.constant 0 : i32
    %c0_i32_0 = arith.constant 0 : i32
    %c0_i32_1 = arith.constant 0 : i32
    return %c0_i32, %c0_i32_0 : i32, i32
  }
  func.func @transform_4(%arg0: i32) -> (i32, i32) {
    %c0_i32 = arith.constant 0 : i32
    %c0_i32_0 = arith.constant 0 : i32
    %c0_i32_1 = arith.constant 0 : i32
    return %c0_i32, %c0_i32_0 : i32, i32
  }
  func.func @transform_5(%arg0: i32) -> (i32, i32) {
    %c0_i32 = arith.constant 0 : i32
    %c0_i32_0 = arith.constant 0 : i32
    return %arg0, %c0_i32 : i32, i32
  }
}

</mosaic_0001>

<llo_original>
// kernel: tpu_custom_call.1
$region0: #{tpu_custom_call.1}
  #allocation0 [shape = 'u32[]', space=smem, size = 0x4, offset = 0x4, fixed_abs, tag = 'smem constant byte address 0x4 - core index']
  #allocation1 [shape = 'u32[72,128]{1,0:T(1,128)}', space=vmem, size = 0x9000, scoped, tag = 'internal scratch']
  %s0 = inlined_call_operand.hbm [shape: f32[16,32], index: 0, kind: input, shape index: {}]
  %s1 = inlined_call_operand.hbm [shape: bf16[32,32], index: 1, kind: input, shape index: {}]
  %s2 = inlined_call_operand.vmem [shape: f32[1,32], index: 2, kind: input, shape index: {}]
  %s3 = inlined_call_operand.hbm [shape: bf16[32,32], index: 3, kind: input, shape index: {}]
  %s4 = inlined_call_operand.vmem [shape: f32[1,32], index: 4, kind: input, shape index: {}]
  %s5 = inlined_call_operand.hbm [shape: f32[16,32], index: 5, kind: output, shape index: {}]
  %s6 = sld [smem:[#allocation0]]
  $region65: #{tpu_custom_call.1} parent=0
    _
  %s8 = ssub.s32 1, %s6
  %s9 = scalar_select 0, %s8, %s6
  $region1: #{tpu_custom_call.1} parent=0
    #allocation2 [shape = 'u8[8192]{0}', space=vmem, size = 0x2000, scoped, tag = 'input window, operand 0']
    #allocation3 [shape = 's32[2]{0}', space=sflag, size = 0x8, scoped, tag = 'scoped memory for tpu_custom_call.1']
    #allocation4 [shape = 's32[2]{0}', space=sflag, size = 0x8, scoped, tag = 'scoped memory for tpu_custom_call.1']
    #allocation5 [shape = 'u8[8192]{0}', space=vmem, size = 0x2000, scoped, tag = 'input window, operand 1, single buffered']
    #allocation6 [shape = 's32[1]{0}', space=sflag, size = 0x4, scoped, tag = 'scoped memory for tpu_custom_call.1']
    #allocation7 [shape = 'u8[8192]{0}', space=vmem, size = 0x2000, scoped, tag = 'input window, operand 3, single buffered']
    #allocation8 [shape = 'u8[8192]{0}', space=vmem, size = 0x2000, scoped, tag = 'output window, operand 0']
    %10 = vsyncpa [#allocation3], 0
    %s11 = scalar_lea.sflag [#allocation3], 1
    %12 = vsyncpa %s11, 0
    %13 = vsyncpa [#allocation6], 0
    %14 = vsyncpa [#allocation4], 0
    %s15 = scalar_lea.sflag [#allocation4], 1
    %16 = vsyncpa %s15, 0
    loop: start=0, step=1, limit=4
    $region2: #{tpu_custom_call.1} parent=1 // loop_pre_header
      _
    $region3: #{tpu_custom_call.1} parent=1 // loop_header
      %s18 = sphi 0, %s22
      %p19 = scmp.ge.s32.totalorder %s18, 4
      %s28 = sphi 0, %s30
      %s31 = sphi 0, %s28
      %s32 = sphi 0, %s31
      %s48 = sphi 0, %s32
      %s52 = sphi 0, %s52
      %s54 = sphi 0, %s52
      %s55 = sphi 0, %s54
      %s69 = sphi 0, %s55
      %s73 = sphi 0, %s73
      %s75 = sphi 0, %s73
      %s76 = sphi 0, %s75
      %s90 = sphi 0, %s76
      %s94 = sphi 0, %s94
      %s96 = sphi 0, %s94
      %s97 = sphi 0, %s96
      %s111 = sphi 0, %s97
      %s115 = sphi 0, %s115
      %s117 = sphi 0, %s115
      %s118 = sphi 0, %s117
      %s132 = sphi 0, %s118
      %s138 = sphi 0, %s140
      %s141 = sphi 0, %s138
      %s142 = sphi 0, %s141
      %s158 = sphi 0, %s142
    $region4: #{tpu_custom_call.1} parent=1 // loop_header_branch
      %21 = sbr.rel (%p19) target = $region8
    $region5: #{tpu_custom_call.1} parent=1 // loop_body
      %s23 = ssub.s32 %s18, 1
      %s24 = ssub.s32 %s18, 2
      %s25 = sadd.s32 %s18, 1
      %s26 = ssub.s32 %s18, %s25
      %p27 = scmp.eq.s32.totalorder %s26, 0
      %s29 = sadd.s32 %s28, 1
      %s30 = scalar_select %p27, %s28, %s29
      %p33 = pneg %p27
      %p34 = scmp.eq.s32.totalorder %s18, 1
      %p35 = por %p33, %p34
      %p36 = scmp.ne.s32.totalorder %s28, %s31
      %p37 = scmp.eq.s32.totalorder %s18, 0
      %p38 = por %p36, %p37
      %p39 = scmp.ne.s32.totalorder %s28, %s31
      %p40 = scmp.eq.s32.totalorder %s23, 1
      %p41 = por %p39, %p40
      %p42 = scmp.ne.s32.totalorder %s31, %s32
      %p43 = scmp.eq.s32.totalorder %s23, 0
      %p44 = por %p42, %p43
      %p45 = scmp.ne.s32.totalorder %s31, %s32
      %p46 = scmp.eq.s32.totalorder %s24, 1
      %p47 = por %p45, %p46
      %p49 = scmp.ne.s32.totalorder %s32, %s48
      %p50 = scmp.eq.s32.totalorder %s24, 0
      %p51 = por %p49, %p50
      %s53 = sadd.s32 %s52, 1
      %p56 = scmp.eq.s32.totalorder %s18, 1
      %p57 = scmp.ne.s32.totalorder %s52, %s54
      %p58 = scmp.eq.s32.totalorder %s18, 0
      %p59 = por %p57, %p58
      %p60 = scmp.ne.s32.totalorder %s52, %s54
      %p61 = scmp.eq.s32.totalorder %s23, 1
      %p62 = por %p60, %p61
      %p63 = scmp.ne.s32.totalorder %s54, %s55
      %p64 = scmp.eq.s32.totalorder %s23, 0
      %p65 = por %p63, %p64
      %p66 = scmp.ne.s32.totalorder %s54, %s55
      %p67 = scmp.eq.s32.totalorder %s24, 1
      %p68 = por %p66, %p67
      %p70 = scmp.ne.s32.totalorder %s55, %s69
      %p71 = scmp.eq.s32.totalorder %s24, 0
      %p72 = por %p70, %p71
      %s74 = sadd.s32 %s73, 1
      %p77 = scmp.eq.s32.totalorder %s18, 1
      %p78 = scmp.ne.s32.totalorder %s73, %s75
      %p79 = scmp.eq.s32.totalorder %s18, 0
      %p80 = por %p78, %p79
      %p81 = scmp.ne.s32.totalorder %s73, %s75
      %p82 = scmp.eq.s32.totalorder %s23, 1
      %p83 = por %p81, %p82
      %p84 = scmp.ne.s32.totalorder %s75, %s76
      %p85 = scmp.eq.s32.totalorder %s23, 0
      %p86 = por %p84, %p85
      %p87 = scmp.ne.s32.totalorder %s75, %s76
      %p88 = scmp.eq.s32.totalorder %s24, 1
      %p89 = por %p87, %p88
      %p91 = scmp.ne.s32.totalorder %s76, %s90
      %p92 = scmp.eq.s32.totalorder %s24, 0
      %p93 = por %p91, %p92
      %s95 = sadd.s32 %s94, 1
      %p98 = scmp.eq.s32.totalorder %s18, 1
      %p99 = scmp.ne.s32.totalorder %s94, %s96
      %p100 = scmp.eq.s32.totalorder %s18, 0
      %p101 = por %p99, %p100
      %p102 = scmp.ne.s32.totalorder %s94, %s96
      %p103 = scmp.eq.s32.totalorder %s23, 1
      %p104 = por %p102, %p103
      %p105 = scmp.ne.s32.totalorder %s96, %s97
      %p106 = scmp.eq.s32.totalorder %s23, 0
      %p107 = por %p105, %p106
      %p108 = scmp.ne.s32.totalorder %s96, %s97
      %p109 = scmp.eq.s32.totalorder %s24, 1
      %p110 = por %p108, %p109
      %p112 = scmp.ne.s32.totalorder %s97, %s111
      %p113 = scmp.eq.s32.totalorder %s24, 0
      %p114 = por %p112, %p113
      %s116 = sadd.s32 %s115, 1
      %p119 = scmp.eq.s32.totalorder %s18, 1
      %p120 = scmp.ne.s32.totalorder %s115, %s117
      %p121 = scmp.eq.s32.totalorder %s18, 0
      %p122 = por %p120, %p121
      %p123 = scmp.ne.s32.totalorder %s115, %s117
      %p124 = scmp.eq.s32.totalorder %s23, 1
      %p125 = por %p123, %p124
      %p126 = scmp.ne.s32.totalorder %s117, %s118
      %p127 = scmp.eq.s32.totalorder %s23, 0
      %p128 = por %p126, %p127
      %p129 = scmp.ne.s32.totalorder %s117, %s118
      %p130 = scmp.eq.s32.totalorder %s24, 1
      %p131 = por %p129, %p130
      %p133 = scmp.ne.s32.totalorder %s118, %s132
      %p134 = scmp.eq.s32.totalorder %s24, 0
      %p135 = por %p133, %p134
      %s136 = ssub.s32 %s18, %s25
      %p137 = scmp.eq.s32.totalorder %s136, 0
      %s139 = sadd.s32 %s138, 1
      %s140 = scalar_select %p137, %s138, %s139
      %p143 = pneg %p137
      %p144 = scmp.eq.s32.totalorder %s18, 1
      %p145 = por %p143, %p144
      %p146 = scmp.ne.s32.totalorder %s138, %s141
      %p147 = scmp.eq.s32.totalorder %s18, 0
      %p148 = por %p146, %p147
      %p149 = scmp.ne.s32.totalorder %s138, %s141
      %p150 = scmp.eq.s32.totalorder %s23, 1
      %p151 = por %p149, %p150
      %p152 = scmp.ne.s32.totalorder %s141, %s142
      %p153 = scmp.eq.s32.totalorder %s23, 0
      %p154 = por %p152, %p153
      %p155 = scmp.ne.s32.totalorder %s141, %s142
      %p156 = scmp.eq.s32.totalorder %s24, 1
      %p157 = por %p155, %p156
      %p159 = scmp.ne.s32.totalorder %s142, %s158
      %p160 = scmp.eq.s32.totalorder %s24, 0
      %p161 = por %p159, %p160
      %p162 = scmp.le.s32.totalorder 1, %s18
      %p163 = scmp.lt.s32.totalorder %s18, 3
      %p164 = pnand %p162, %p163
      %p165 = pneg %p164
      // Predicated region
      $region9: #{tpu_custom_call.1} parent=5 // pred_check
        _
      $region10: #{tpu_custom_call.1} parent=5 // pred_check_branch
        %167 = sbr.rel (%p164) target = $region12
      $region11: #{tpu_custom_call.1} parent=5 // pred_region
        %s168 = ssub.s32 %s18, 1
        // Predicated region
        $region13: #{tpu_custom_call.1} parent=11 // pred_check
          %p169 = pneg %p65
        $region14: #{tpu_custom_call.1} parent=11 // pred_check_branch
          %171 = sbr.rel (%p169) target = $region16
        $region15: #{tpu_custom_call.1} parent=11 // pred_region
          %173 = vsyncadd [#allocation6], 0
          %s174 = sshll.u32 %s1, 4
          %s175 = int_to_ptr.hbm [resolvable:$true] %s174
          %s176 = sshll.u32 [#allocation5], 4
          %s177 = int_to_ptr.vmem [resolvable:$true] %s176
          %182 = dma.hbm_to_vmem [thread:$0]  %s175, 256, %s177, [#allocation6], 64, 64, 4
        $region16: #{tpu_custom_call.1} parent=11 // pred_fallthru
          _
        // Predicated region
        $region17: #{tpu_custom_call.1} parent=11 // pred_check
          %p183 = pneg %p86
        $region18: #{tpu_custom_call.1} parent=11 // pred_check_branch
          %185 = sbr.rel (%p183) target = $region20
        $region19: #{tpu_custom_call.1} parent=11 // pred_region
          _
        $region20: #{tpu_custom_call.1} parent=11 // pred_fallthru
          _
        // Predicated region
        $region21: #{tpu_custom_call.1} parent=11 // pred_check
          %p186 = pneg %p107
        $region22: #{tpu_custom_call.1} parent=11 // pred_check_branch
          %188 = sbr.rel (%p186) target = $region24
        $region23: #{tpu_custom_call.1} parent=11 // pred_region
          %190 = vsyncadd [#allocation6], 0
          %s191 = sshll.u32 %s3, 4
          %s192 = int_to_ptr.hbm [resolvable:$true] %s191
          %s193 = sshll.u32 [#allocation7], 4
          %s194 = int_to_ptr.vmem [resolvable:$true] %s193
          %199 = dma.hbm_to_vmem [thread:$0]  %s192, 256, %s194, [#allocation6], 64, 64, 4
        $region24: #{tpu_custom_call.1} parent=11 // pred_fallthru
          _
        // Predicated region
        $region25: #{tpu_custom_call.1} parent=11 // pred_check
          %p200 = pneg %p128
        $region26: #{tpu_custom_call.1} parent=11 // pred_check_branch
          %202 = sbr.rel (%p200) target = $region28
        $region27: #{tpu_custom_call.1} parent=11 // pred_region
          _
        $region28: #{tpu_custom_call.1} parent=11 // pred_fallthru
          _
      $region12: #{tpu_custom_call.1} parent=5 // pred_fallthru
        _
      %p203 = scmp.lt.s32.totalorder %s18, 2
      // Predicated region
      $region29: #{tpu_custom_call.1} parent=5 // pred_check
        %p204 = pneg %p203
      $region30: #{tpu_custom_call.1} parent=5 // pred_check_branch
        %206 = sbr.rel (%p204) target = $region32
      $region31: #{tpu_custom_call.1} parent=5 // pred_region
        // Predicated region
        $region33: #{tpu_custom_call.1} parent=31 // pred_check
          %p207 = pneg %p38
        $region34: #{tpu_custom_call.1} parent=31 // pred_check_branch
          %209 = sbr.rel (%p207) target = $region36
        $region35: #{tpu_custom_call.1} parent=31 // pred_region
          %s210 = sand.u32 %s28, 1
          %s211 = scalar_lea.sflag [#allocation3], %s210
          %s212 = sand.u32 %s28, 1
          %s213 = smul.addr %s212, 8
          %s214 = scalar_lea.vmem [#allocation2], %s213
          %216 = vsyncadd %s211, 0
          %s217 = smul.addr %s18, 8
          %s218 = scalar_lea.hbm %s0, %s217
          %s220 = sshll.u32 %s218, 4
          %s221 = int_to_ptr.hbm [resolvable:$true] %s220
          %s222 = sshll.u32 %s214, 4
          %s223 = int_to_ptr.vmem [resolvable:$true] %s222
          %225 = dma.hbm_to_vmem [thread:$0]  %s221, 128, %s223, %s211
        $region36: #{tpu_custom_call.1} parent=31 // pred_fallthru
          _
      $region32: #{tpu_custom_call.1} parent=5 // pred_fallthru
        _
      %p226 = scmp.le.s32.totalorder 1, %s18
      %p227 = scmp.lt.s32.totalorder %s18, 3
      %p228 = pnand %p226, %p227
      %p229 = pneg %p228
      // Predicated region
      $region37: #{tpu_custom_call.1} parent=5 // pred_check
        _
      $region38: #{tpu_custom_call.1} parent=5 // pred_check_branch
        %231 = sbr.rel (%p228) target = $region40
      $region39: #{tpu_custom_call.1} parent=5 // pred_region
        %s232 = ssub.s32 %s18, 1
        %s233 = sand.u32 %s31, 1
        %s234 = scalar_lea.sflag [#allocation3], %s233
        %s235 = sand.u32 %s31, 1
        %s236 = smul.addr %s235, 8
        %s237 = scalar_lea.vmem [#allocation2], %s236
        // Predicated region
        $region41: #{tpu_custom_call.1} parent=39 // pred_check
          %p238 = pneg %p44
        $region42: #{tpu_custom_call.1} parent=39 // pred_check_branch
          %240 = sbr.rel (%p238) target = $region44
        $region43: #{tpu_custom_call.1} parent=39 // pred_region
          %242 = dma.done %s234, 128
        $region44: #{tpu_custom_call.1} parent=39 // pred_fallthru
          _
        // Predicated region
        $region45: #{tpu_custom_call.1} parent=39 // pred_check
          %p243 = pneg %p65
        $region46: #{tpu_custom_call.1} parent=39 // pred_check_branch
          %245 = sbr.rel (%p243) target = $region48
        $region47: #{tpu_custom_call.1} parent=39 // pred_region
          %247 = dma.done [#allocation6], 256
        $region48: #{tpu_custom_call.1} parent=39 // pred_fallthru
          _
        // Predicated region
        $region49: #{tpu_custom_call.1} parent=39 // pred_check
          %p248 = pneg %p107
        $region50: #{tpu_custom_call.1} parent=39 // pred_check_branch
          %250 = sbr.rel (%p248) target = $region52
        $region51: #{tpu_custom_call.1} parent=39 // pred_region
          %252 = dma.done [#allocation6], 256
        $region52: #{tpu_custom_call.1} parent=39 // pred_fallthru
          _
        %s253 = sand.u32 %s31, 1
        %s254 = scalar_lea.sflag [#allocation3], %s253
        %s255 = sand.u32 %s31, 1
        %s256 = smul.addr %s255, 8
        %s257 = scalar_lea.vmem [#allocation2], %s256
        %p258 = pneg %p44
        %p259 = pneg %p41
        %p260 = pneg %p65
        %p261 = pneg %p62
        %p262 = pneg %p86
        %p263 = pneg %p83
        %p264 = pneg %p107
        %p265 = pneg %p104
        %p266 = pneg %p128
        %p267 = pneg %p125
        %p268 = pneg %p154
        %p269 = pneg %p151
        %s270 = sand.u32 %s141, 1
        %s271 = scalar_lea.sflag [#allocation4], %s270
        %s272 = sand.u32 %s141, 1
        %s273 = smul.addr %s272, 8
        %s274 = scalar_lea.vmem [#allocation8], %s273
        %v276 = vld [vmem:[%s237] sm:$0xff]
        %v277 = vpack.c.bf16 %v276, %v276
        %v278 = vld [vmem:[#allocation5] sm:$0xf]
        %v279 = vld [vmem:[#allocation5 + $0x4] sm:$0xf]
        %v280 = vld [vmem:[#allocation5 + $0x8] sm:$0xf]
        %v281 = vld [vmem:[#allocation5 + $0xc] sm:$0xf]
        %v282 = vld [vmem:[%s2] sm:$0x1]
        %v284 = vperm.slane %v282, 0
        %v290 = vunpack.c.l.b16 %v278
        %v291 = vunpack.c.l.b16 %v279
        %v292 = vunpack.c.l.b16 %v280
        %v293 = vunpack.c.l.b16 %v281
        %v294 = vpack.c.b16 %v291, %v290
        %v295 = vpack.c.b16 %v293, %v292
        %vm298 = vcmask 261120
        %v300 = vsel %vm298, %v277, 0
        %302 = vmatpush.bf16.msra.mxu0 0
        %303 = vmatpush.bf16.msra.mxu0 0
        %304 = vmatpush.bf16.msra.mxu0 0
        %305 = vmatpush.bf16.msra.mxu0 0
        %306 = vmatpush.bf16.msra.mxu0 0
        %307 = vmatpush.bf16.msra.mxu0 0
        %308 = vmatpush.bf16.msra.mxu0 %v295
        %309 = vmatpush.bf16.msra.mxu0 %v294
        %310 = vmatmul.bf16.gmra.mxu0 %v300
        %v311 = vpop.f32.mrf.mxu0
        %v312 = vadd.f32 %v284, %v311
        %v313 = vpop.f32.mrf.mxu0
        %314 = vdwg.mxu0
        %v315 = vmax.f32 %v312, 0.0
        %v316 = vpack.c.bf16 %v315, %v315
        %v317 = vld [vmem:[#allocation7] sm:$0xf]
        %v318 = vld [vmem:[#allocation7 + $0x4] sm:$0xf]
        %v319 = vld [vmem:[#allocation7 + $0x8] sm:$0xf]
        %v320 = vld [vmem:[#allocation7 + $0xc] sm:$0xf]
        %v321 = vld [vmem:[%s4] sm:$0x1]
        %v323 = vperm.slane %v321, 0
        %v329 = vunpack.c.l.b16 %v317
        %v330 = vunpack.c.l.b16 %v318
        %v331 = vunpack.c.l.b16 %v319
        %v332 = vunpack.c.l.b16 %v320
        %v333 = vpack.c.b16 %v330, %v329
        %v334 = vpack.c.b16 %v332, %v331
        %v338 = vsel %vm298, %v316, 0
        %340 = vmatpush.bf16.msra.mxu0 0
        %341 = vmatpush.bf16.msra.mxu0 0
        %342 = vmatpush.bf16.msra.mxu0 0
        %343 = vmatpush.bf16.msra.mxu0 0
        %344 = vmatpush.bf16.msra.mxu0 0
        %345 = vmatpush.bf16.msra.mxu0 0
        %346 = vmatpush.bf16.msra.mxu0 %v334
        %347 = vmatpush.bf16.msra.mxu0 %v333
        %348 = vmatmul.bf16.gmra.mxu0 %v338
        %v349 = vpop.f32.mrf.mxu0
        %v350 = vadd.f32 %v323, %v349
        %v351 = vpop.f32.mrf.mxu0
        %352 = vdwg.mxu0
        %v353 = vadd.f32 %v350, %v276
        %354 = vst.msk [vmem:[%s274] sm:$0xff] %vm298, %v353
        %s355 = sand.u32 %s141, 1
        %s356 = scalar_lea.sflag [#allocation4], %s355
        %s357 = sand.u32 %s141, 1
        %s358 = smul.addr %s357, 8
        %s359 = scalar_lea.vmem [#allocation8], %s358
        // Predicated region
        $region53: #{tpu_custom_call.1} parent=39 // pred_check
          %p360 = pneg %p151
        $region54: #{tpu_custom_call.1} parent=39 // pred_check_branch
          %362 = sbr.rel (%p360) target = $region56
        $region55: #{tpu_custom_call.1} parent=39 // pred_region
          %364 = vsyncadd %s356, 0
          %s365 = smul.addr %s23, 8
          %s366 = scalar_lea.hbm %s5, %s365
          %s368 = sshll.u32 %s359, 4
          %s369 = int_to_ptr.vmem [resolvable:$true] %s368
          %s370 = sshll.u32 %s366, 4
          %s371 = int_to_ptr.hbm [resolvable:$true] %s370
          %373 = dma.vmem_to_hbm [thread:$0]  %s369, 128, %s371, %s356
        $region56: #{tpu_custom_call.1} parent=39 // pred_fallthru
          _
      $region40: #{tpu_custom_call.1} parent=5 // pred_fallthru
        _
      %p374 = scmp.le.s32.totalorder 2, %s18
      // Predicated region
      $region57: #{tpu_custom_call.1} parent=5 // pred_check
        %p375 = pneg %p374
      $region58: #{tpu_custom_call.1} parent=5 // pred_check_branch
        %377 = sbr.rel (%p375) target = $region60
      $region59: #{tpu_custom_call.1} parent=5 // pred_region
        %s378 = ssub.s32 %s18, 2
        // Predicated region
        $region61: #{tpu_custom_call.1} parent=59 // pred_check
          %p379 = pneg %p157
        $region62: #{tpu_custom_call.1} parent=59 // pred_check_branch
          %381 = sbr.rel (%p379) target = $region64
        $region63: #{tpu_custom_call.1} parent=59 // pred_region
          %s382 = sand.u32 %s142, 1
          %s383 = scalar_lea.sflag [#allocation4], %s382
          %s384 = sand.u32 %s142, 1
          %s385 = smul.addr %s384, 8
          %s386 = scalar_lea.vmem [#allocation8], %s385
          %388 = dma.done %s383, 128
        $region64: #{tpu_custom_call.1} parent=59 // pred_fallthru
          _
      $region60: #{tpu_custom_call.1} parent=5 // pred_fallthru
        _
    $region6: #{tpu_custom_call.1} parent=1 // loop_footer
      %s22 = sadd.s32 1, %s18
    $region7: #{tpu_custom_call.1} parent=1 // loop_footer_branch
      %17 = sbr.rel target = $region3
    $region8: #{tpu_custom_call.1} parent=1 // loop_exit
      _
    %389 = vsyncpa [#allocation3], 1
    %s390 = scalar_lea.sflag [#allocation3], 1
    %391 = vsyncpa %s390, 1
    %392 = vsyncpa [#allocation6], 1
    %393 = vsyncpa [#allocation4], 1
    %s394 = scalar_lea.sflag [#allocation4], 1
    %395 = vsyncpa %s394, 1

</llo_original>
